<compile_context>
chip_gen: v7x
topology: tpu7x:2x2x1
jax: 0.10.0
libtpu: 0.0.40
codegen_flags: <defaults>
</compile_context>

<pallas_src>
import jax
import jax.numpy as jnp
from jax.experimental import pallas as pl
from jax.experimental.pallas import tpu as pltpu


def _learned_swish_kernel(slope_ref, x_ref, o_ref):
    # slope_ref: (1, 1) f32 scalar in SMEM
    # x_ref / o_ref: (TM, TL) VMEM tiles
    slope = slope_ref[0, 0]
    # Compute in f32 (v5e VPU/EUP has no bf16 path); cast back on store.
    xf = x_ref[...].astype(jnp.float32)
    y = slope * xf * jax.nn.sigmoid(xf)
    o_ref[...] = y.astype(o_ref.dtype)


def learned_swish(x: jax.Array, slope, *, tl: int = 512, max_tm: int = 256) -> jax.Array:
    """Pallas equivalent of LearnedSwish.forward: slope * x * sigmoid(x)."""
    orig_shape = x.shape
    dtype = x.dtype
    n = x.size

    # Sublane alignment by element width (8 for 4B, 16 for 2B, 32 for 1B dtypes).
    itemsize = jnp.dtype(dtype).itemsize
    sub = {4: 8, 2: 16, 1: 32}.get(itemsize, 8)

    # Flatten to a lane-dense 2D slab: last dim = tl (multiple of 128),
    # row-tile tm a multiple of the sublane alignment, sized for VMEM headroom
    # (tm=256, tl=512, f32 -> 512 KiB per buffer; double-buffered in+out stays
    #  well under the v7x 32 MiB scoped VMEM limit).
    rows_needed = pl.cdiv(n, tl)
    tm = max_tm if rows_needed >= max_tm else sub * pl.cdiv(rows_needed, sub)
    rows = tm * pl.cdiv(rows_needed, tm)
    n_pad = rows * tl

    x_flat = x.reshape(-1)
    if n_pad != n:
        x_flat = jnp.pad(x_flat, (0, n_pad - n))
    x2d = x_flat.reshape(rows, tl)

    slope2d = jnp.asarray(slope, dtype=jnp.float32).reshape(1, 1)

    out = pl.pallas_call(
        _learned_swish_kernel,
        out_shape=jax.ShapeDtypeStruct((rows, tl), dtype),
        grid=(rows // tm,),
        in_specs=[
            pl.BlockSpec(memory_space=pltpu.MemorySpace.SMEM),  # slope scalar
            pl.BlockSpec((tm, tl), lambda i: (i, 0)),            # x tile
        ],
        out_specs=pl.BlockSpec((tm, tl), lambda i: (i, 0)),
        compiler_params=pltpu.CompilerParams(
            dimension_semantics=("parallel",),
        ),
    )(slope2d, x2d)

    return out.reshape(-1)[:n].reshape(orig_shape)


if __name__ == "__main__":
    key = jax.random.PRNGKey(0)
    B, C, H, W = 2, 4, 16, 16
    x = jax.random.normal(key, (B, C, H, W), dtype=jnp.float32)
    slope = 1.5  # learnable nn.Parameter in the PyTorch module; plain scalar here

    y = learned_swish(x, slope)
    y = jax.block_until_ready(y)

    # reference: slope * x * sigmoid(x)
    y_ref = slope * x * jax.nn.sigmoid(x)
    assert y.shape == x.shape, y.shape
    assert jnp.allclose(y, y_ref, atol=1e-5, rtol=1e-5), float(jnp.max(jnp.abs(y - y_ref)))

    print("KERNEL_OK")
</pallas_src>

<mosaic_0001>
module attributes {stable_mosaic.version = 11 : i64} {
  func.func @_learned_swish_kernel(%arg0: i32, %arg1: memref<1x1xf32, #tpu.memory_space<smem>>, %arg2: memref<8x512xf32, #tpu.memory_space<vmem>>, %arg3: memref<8x512xf32, #tpu.memory_space<vmem>>) attributes {dimension_semantics = [#tpu.dimension_semantics<parallel>], iteration_bounds = array<i64: 1>, scalar_prefetch = 0 : i64, scratch_operands = 0 : i64, tpu.core_type = #tpu.core_type<tc>, window_params = [{transform_indices = @transform_0, window_bounds = array<i64: 1, 1>}, {transform_indices = @transform_1, window_bounds = array<i64: 8, 512>}, {transform_indices = @transform_2, window_bounds = array<i64: 8, 512>}]} {
    %c0 = arith.constant 0 : index
    %c0_0 = arith.constant 0 : index
    %0 = memref.load %arg1[%c0, %c0_0] : memref<1x1xf32, #tpu.memory_space<smem>>
    %c0_1 = arith.constant 0 : index
    %c0_2 = arith.constant 0 : index
    %1 = vector.load %arg2[%c0_1, %c0_2] : memref<8x512xf32, #tpu.memory_space<vmem>>, vector<8x512xf32>
    %2 = vector.broadcast %0 : f32 to vector<8x512xf32>
    %3 = arith.mulf %2, %1 : vector<8x512xf32>
    %4 = arith.negf %1 : vector<8x512xf32>
    %5 = math.exp %4 : vector<8x512xf32>
    %cst = arith.constant 1.000000e+00 : f32
    %6 = vector.broadcast %cst : f32 to vector<8x512xf32>
    %7 = arith.addf %6, %5 : vector<8x512xf32>
    %8 = arith.divf %6, %7 : vector<8x512xf32>
    %9 = arith.mulf %3, %8 : vector<8x512xf32>
    %c0_3 = arith.constant 0 : index
    %c0_4 = arith.constant 0 : index
    %10 = vector.load %arg3[%c0_3, %c0_4] : memref<8x512xf32, #tpu.memory_space<vmem>>, vector<8x512xf32>
    tpu.vector_store %arg3[%c0_3, %c0_4], %9 {strides = array<i32>} : memref<8x512xf32, #tpu.memory_space<vmem>>, vector<8x512xf32>,
    return
  }
  func.func @transform_0(%arg0: i32) -> (i32, i32) {
    %c0_i32 = arith.constant 0 : i32
    %c0_i32_0 = arith.constant 0 : i32
    %c0_i32_1 = arith.constant 0 : i32
    return %c0_i32, %c0_i32_0 : i32, i32
  }
  func.func @transform_1(%arg0: i32) -> (i32, i32) {
    %c0_i32 = arith.constant 0 : i32
    %c0_i32_0 = arith.constant 0 : i32
    return %arg0, %c0_i32 : i32, i32
  }
  func.func @transform_2(%arg0: i32) -> (i32, i32) {
    %c0_i32 = arith.constant 0 : i32
    %c0_i32_0 = arith.constant 0 : i32
    return %arg0, %c0_i32 : i32, i32
  }
}

</mosaic_0001>

<llo_original>
// kernel: tpu_custom_call.1
$region0: #{tpu_custom_call.1}
  #allocation0 [shape = 'u32[]', space=smem, size = 0x4, offset = 0x4, fixed_abs, tag = 'smem constant byte address 0x4 - core index']
  #allocation1 [shape = 'u32[144,128]{1,0:T(1,128)}', space=vmem, size = 0x12000, scoped, tag = 'internal scratch']
  #allocation2 [shape = 'f32[1,1]{1,0:T(1,128)S(6)}', space=smem, size = 0x200, scoped, tag = 'scoped memory for tpu_custom_call.1']
  %s0 = inlined_call_operand.<no memory space> [shape: f32[1,1], index: 0, kind: input, shape index: {}]
  %s1 = inlined_call_operand.hbm [shape: f32[8,512], index: 1, kind: input, shape index: {}]
  %s2 = inlined_call_operand.hbm [shape: f32[8,512], index: 2, kind: output, shape index: {}]
  %s3 = sld [smem:[#allocation0]]
  $region22: #{tpu_custom_call.1} parent=0
    _
  %s5 = ssub.s32 1, %s3
  %s6 = scalar_select 0, %s5, %s3
  %7 = sst [smem:[#allocation2]] %s0
  $region1: #{tpu_custom_call.1} parent=0
    #allocation3 [shape = 'u8[16384]{0}', space=vmem, size = 0x4000, scoped, tag = 'input window, operand 1, single buffered']
    #allocation4 [shape = 's32[1]{0}', space=sflag, size = 0x4, scoped, tag = 'scoped memory for tpu_custom_call.1']
    #allocation5 [shape = 's32[1]{0}', space=sflag, size = 0x4, scoped, tag = 'scoped memory for tpu_custom_call.1']
    #allocation6 [shape = 'u8[16384]{0}', space=vmem, size = 0x4000, scoped, tag = 'output window, operand 0, single buffered']
    %8 = vsyncpa [#allocation4], 0
    %9 = vsyncpa [#allocation5], 0
    // Predicated region
    $region2: #{tpu_custom_call.1} parent=1 // pred_check
      _
    $region3: #{tpu_custom_call.1} parent=1 // pred_check_branch
      %11 = sbr.rel (0) target = $region5
    $region4: #{tpu_custom_call.1} parent=1 // pred_region
      _
    $region5: #{tpu_custom_call.1} parent=1 // pred_fallthru
      _
    // Predicated region
    $region6: #{tpu_custom_call.1} parent=1 // pred_check
      _
    $region7: #{tpu_custom_call.1} parent=1 // pred_check_branch
      %13 = sbr.rel (0) target = $region9
    $region8: #{tpu_custom_call.1} parent=1 // pred_region
      %s15 = ssub.s32 512, 512
      %16 = vsyncadd [#allocation4], %s15
      %s18 = sshll.u32 [#allocation3], 4
      %s19 = int_to_ptr.vmem [resolvable:$true] %s18
      %21 = dma.hbm_to_vmem [thread:$0]  %s1, 512, %s19, [#allocation4]
    $region9: #{tpu_custom_call.1} parent=1 // pred_fallthru
      _
    // Predicated region
    $region10: #{tpu_custom_call.1} parent=1 // pred_check
      _
    $region11: #{tpu_custom_call.1} parent=1 // pred_check_branch
      %23 = sbr.rel (0) target = $region13
    $region12: #{tpu_custom_call.1} parent=1 // pred_region
      %24 = dma.done [#allocation4], 512
    $region13: #{tpu_custom_call.1} parent=1 // pred_fallthru
      _
    %s25 = sld [smem:[#allocation2]]
    %v26 = vld [vmem:[#allocation3] sm:$0xff]
    %v27 = vld [vmem:[#allocation3 + $0x8] sm:$0xff]
    %v28 = vld [vmem:[#allocation3 + $0x10] sm:$0xff]
    %v29 = vld [vmem:[#allocation3 + $0x18] sm:$0xff]
    %v30 = vstv %s25
    %v31 = vmul.f32 %v30, %v26
    %v32 = vmul.f32 %v30, %v27
    %v33 = vmul.f32 %v30, %v28
    %v34 = vmul.f32 %v30, %v29
    %v35 = vxor.u32 %v26, 2147483648
    %v36 = vxor.u32 %v27, 2147483648
    %v37 = vxor.u32 %v28, 2147483648
    %v38 = vxor.u32 %v29, 2147483648
    %v39 = vmul.f32 %v35, 1.442695
    %v40 = vpow.pop %v39
    %v41 = vmul.f32 %v36, 1.442695
    %v42 = vpow.pop %v41
    %v43 = vmul.f32 %v37, 1.442695
    %v44 = vpow.pop %v43
    %v45 = vmul.f32 %v38, 1.442695
    %v46 = vpow.pop %v45
    %v47 = vadd.f32 %v40, 1.0
    %v48 = vadd.f32 %v42, 1.0
    %v49 = vadd.f32 %v44, 1.0
    %v50 = vadd.f32 %v46, 1.0
    %v51 = vrcp.pop %v47
    %v52 = vmul.f32 1.0, %v51
    %v53 = vrcp.pop %v48
    %v54 = vmul.f32 1.0, %v53
    %v55 = vrcp.pop %v49
    %v56 = vmul.f32 1.0, %v55
    %v57 = vrcp.pop %v50
    %v58 = vmul.f32 1.0, %v57
    %v59 = vmul.f32 %v31, %v52
    %v60 = vmul.f32 %v32, %v54
    %v61 = vmul.f32 %v33, %v56
    %v62 = vmul.f32 %v34, %v58
    %63 = vst [vmem:[#allocation6] sm:$0xff] %v59
    %64 = vst [vmem:[#allocation6 + $0x8] sm:$0xff] %v60
    %65 = vst [vmem:[#allocation6 + $0x10] sm:$0xff] %v61
    %66 = vst [vmem:[#allocation6 + $0x18] sm:$0xff] %v62
    // Predicated region
    $region14: #{tpu_custom_call.1} parent=1 // pred_check
      _
    $region15: #{tpu_custom_call.1} parent=1 // pred_check_branch
      %68 = sbr.rel (0) target = $region17
    $region16: #{tpu_custom_call.1} parent=1 // pred_region
      %s70 = ssub.s32 512, 512
      %71 = vsyncadd [#allocation5], %s70
      %s73 = sshll.u32 [#allocation6], 4
      %s74 = int_to_ptr.vmem [resolvable:$true] %s73
      %76 = dma.vmem_to_hbm [thread:$0]  %s74, 512, %s2, [#allocation5]
    $region17: #{tpu_custom_call.1} parent=1 // pred_fallthru
      _
    // Predicated region
    $region18: #{tpu_custom_call.1} parent=1 // pred_check
      _
    $region19: #{tpu_custom_call.1} parent=1 // pred_check_branch
      %78 = sbr.rel (0) target = $region21
    $region20: #{tpu_custom_call.1} parent=1 // pred_region
      %79 = dma.done [#allocation5], 512
    $region21: #{tpu_custom_call.1} parent=1 // pred_fallthru
      _
    %80 = vsyncpa [#allocation4], 1
    %81 = vsyncpa [#allocation5], 1

</llo_original>
